<compile_context>
chip_gen: v5e
topology: v5e:2x2
jax: 0.10.0
libtpu: 0.0.40
codegen_flags: <defaults>
</compile_context>

<pallas_src>
import functools
import math

import jax
import jax.numpy as jnp
from jax.experimental import pallas as pl
from jax.experimental.pallas import tpu as pltpu


# --------------------------------------------------------------------------- #
# Kernel
# --------------------------------------------------------------------------- #
def _block_kernel(x_ref, ln_ref, wqkv_ref, bqkv_ref, wproj_ref, o_ref, wa_ref,
                  *, n_heads, eps):
    b_blk, T, D = x_ref.shape
    hd = D // n_heads
    R = b_blk * T

    # Flatten the batch block into one row slab (leading-dim merge: free layout-wise).
    x = x_ref[...].reshape(R, D)                                # (R, D) f32

    lnp = ln_ref[...]                                           # (8, D) packed params
    g1, b1 = lnp[0:1], lnp[1:2]
    g2, b2 = lnp[2:3], lnp[3:4]
    bproj = lnp[4:5]

    # ---- LayerNorm 1 (f32 elementwise, rsqrt on the EUP) ----
    mu = jnp.mean(x, axis=-1, keepdims=True)
    var = jnp.mean((x - mu) ** 2, axis=-1, keepdims=True)
    y = (x - mu) * jax.lax.rsqrt(var + eps) * g1 + b1

    # ---- qkv projection (bf16 operands, f32 accumulation).  dp_scale is
    # pre-folded into the q columns of wqkv / bqkv at parameter-prep time. ----
    qkv = jnp.dot(y.astype(jnp.bfloat16), wqkv_ref[...],
                  preferred_element_type=jnp.float32) + bqkv_ref[...]   # (R, 3D) f32

    # ---- per-sample, per-head scaled dot-product attention ----
    for s in range(b_blk):
        r0 = s * T
        qkv_s = qkv[r0:r0 + T]                                  # (T, 3D), static slice
        for h in range(n_heads):
            lo = h * hd
            q_h = qkv_s[:, lo:lo + hd].astype(jnp.bfloat16)                 # (T, hd)
            k_h = qkv_s[:, D + lo:D + lo + hd].astype(jnp.bfloat16)         # (T, hd)
            v_h = qkv_s[:, 2 * D + lo:2 * D + lo + hd].astype(jnp.bfloat16)

            # scores: contract last dims of q and k -> q @ k.T without an explicit transpose.
            sc = jax.lax.dot_general(q_h, k_h, (((1,), (1,)), ((), ())),
                                     preferred_element_type=jnp.float32)    # (T, T)
            sc = sc - jnp.max(sc, axis=-1, keepdims=True)
            p = jnp.exp(sc)
            # exact reciprocal: still on the EUP slot, tighter parity with the reference.
            p = p * pl.reciprocal(jnp.sum(p, axis=-1, keepdims=True), approx=False)

            o_h = jnp.dot(p.astype(jnp.bfloat16), v_h,
                          preferred_element_type=jnp.float32)               # (T, hd)
            # bf16 context slab: stored once, consumed directly by the proj matmul.
            wa_ref[r0:r0 + T, lo:lo + hd] = o_h.astype(jnp.bfloat16)

    # ---- output projection (bf16 operands, f32 accumulation) ----
    attn_out = jnp.dot(wa_ref[...], wproj_ref[...],
                       preferred_element_type=jnp.float32) + bproj          # (R, D)

    # ---- residual 1 ----
    x1 = x + attn_out

    # ---- LayerNorm 2 ----
    mu2 = jnp.mean(x1, axis=-1, keepdims=True)
    var2 = jnp.mean((x1 - mu2) ** 2, axis=-1, keepdims=True)
    z = (x1 - mu2) * jax.lax.rsqrt(var2 + eps) * g2 + b2

    # ---- residual 2 (MLP is the identity stub) ----
    o_ref[...] = (x1 + z).reshape(b_blk, T, D).astype(o_ref.dtype)


# --------------------------------------------------------------------------- #
# Wrapper-side helpers
# --------------------------------------------------------------------------- #
def _pick_batch_block(B, T):
    """Largest divisor of B with a modest flattened row count, keeping >= 2 grid
    steps when B > 1 so both v7x TensorCores get work."""
    best = 1
    for cand in range(1, B + 1):
        if B % cand:
            continue
        if cand * T > 512:
            break
        if B > 1 and B // cand < 2:
            continue
        best = cand
    return best


def _vmem_cap_bytes():
    phys = None
    try:
        phys = getattr(pltpu.get_tpu_info(), "vmem_capacity_bytes", None)
    except Exception:
        phys = None
    if not phys:
        phys = 64 * 1024 * 1024          # conservative (v7x-sized) fallback
    # leave headroom for compiler-internal scratch / spills
    return max(16 * 1024 * 1024, int(phys) - 16 * 1024 * 1024)


def _vmem_budget_bytes(b_blk, T, D):
    f32, b16 = 4, 2
    R = b_blk * T
    io = 2 * 2 * R * D * f32                                   # double-buffered x + out blocks
    weights = ((D * 3 * D + D * D) * b16                        # wqkv + wproj (bf16, single-buffered)
               + 8 * D * f32 + 8 * 3 * D * f32)                 # packed LN params + padded bqkv
    working = (R * 3 * D * f32                                  # qkv
               + 4 * R * D * f32                                # y, attn_out, x1, z
               + 2 * T * T * f32                                # one head's scores + probs
               + R * D * b16                                    # bf16 context slab
               + R * 3 * D * b16)                               # transient bf16 casts (margin)
    est = int(1.25 * (io + weights + working))
    return int(min(max(est, 16 * 1024 * 1024), _vmem_cap_bytes()))


def prepare_params(params, *, n_heads):
    """One-time parameter prep: fold dp_scale into wqkv/bqkv, cast weights to
    bf16, pack the five (1, D) vectors into one sublane-aligned (8, D) block."""
    D = params["wproj"].shape[0]
    hd = D // n_heads
    scale = hd ** -0.5
    col_scale = jnp.concatenate([jnp.full((D,), scale, jnp.float32),
                                 jnp.ones((2 * D,), jnp.float32)])
    wqkv = (params["wqkv"].astype(jnp.float32) * col_scale[None, :]).astype(jnp.bfloat16)
    bqkv = (params["bqkv"][0].astype(jnp.float32) * col_scale).reshape(1, 3 * D)
    wproj = params["wproj"].astype(jnp.bfloat16)

    ln_pack = jnp.zeros((8, D), jnp.float32)
    ln_pack = ln_pack.at[0].set(params["g1"][0])
    ln_pack = ln_pack.at[1].set(params["b1"][0])
    ln_pack = ln_pack.at[2].set(params["g2"][0])
    ln_pack = ln_pack.at[3].set(params["b2"][0])
    ln_pack = ln_pack.at[4].set(params["bproj"][0])
    return {"ln_pack": ln_pack, "wqkv": wqkv, "bqkv": bqkv, "wproj": wproj}


def vit_block_forward(x, prepared, *, n_heads, eps=1e-6):
    B, T, D = x.shape
    assert D % n_heads == 0
    b_blk = _pick_batch_block(B, T)
    grid = (B // b_blk,)

    kernel = functools.partial(_block_kernel, n_heads=n_heads, eps=eps)

    def const_spec(shape):
        # grid-invariant param block: single-buffered (no wasted VMEM copy)
        return pl.BlockSpec(shape, lambda b: (0, 0), pipeline_mode=pl.Buffered(1))

    grid_spec = pltpu.PrefetchScalarGridSpec(
        num_scalar_prefetch=0,
        grid=grid,
        in_specs=[
            pl.BlockSpec((b_blk, T, D), lambda b: (b, 0, 0)),   # x block (double-buffered)
            const_spec((8, D)),                                 # packed g1/b1/g2/b2/bproj
            const_spec((D, 3 * D)),                             # qkv weight (in, out), bf16, scale folded
            const_spec((1, 3 * D)),                             # qkv bias, f32, scale folded
            const_spec((D, D)),                                 # proj weight (in, out), bf16
        ],
        out_specs=pl.BlockSpec((b_blk, T, D), lambda b: (b, 0, 0)),
        scratch_shapes=[pltpu.VMEM((b_blk * T, D), jnp.bfloat16)],   # per-head context slab
    )

    return pl.pallas_call(
        kernel,
        out_shape=jax.ShapeDtypeStruct((B, T, D), x.dtype),
        grid_spec=grid_spec,
        compiler_params=pltpu.CompilerParams(
            dimension_semantics=("parallel",),
            vmem_limit_bytes=_vmem_budget_bytes(b_blk, T, D),
        ),
    )(x, prepared["ln_pack"], prepared["wqkv"], prepared["bqkv"], prepared["wproj"])


# --------------------------------------------------------------------------- #
# Pure-JAX reference (mirrors PyTorch module semantics, f32 throughout)
# --------------------------------------------------------------------------- #
def reference_forward(x, params, *, n_heads, eps=1e-6):
    B, T, D = x.shape
    hd = D // n_heads
    scale = hd ** -0.5

    def ln(v, g, b):
        mu = jnp.mean(v, axis=-1, keepdims=True)
        var = jnp.mean((v - mu) ** 2, axis=-1, keepdims=True)
        return (v - mu) / jnp.sqrt(var + eps) * g[0] + b[0]

    y = ln(x, params["g1"], params["b1"])
    qkv = y @ params["wqkv"] + params["bqkv"][0]
    qkv = qkv.reshape(B, T, 3, n_heads, hd).transpose(2, 0, 3, 1, 4)
    q, k, v = qkv[0], qkv[1], qkv[2]
    dp = jnp.einsum("bhqd,bhkd->bhqk", q, k) * scale
    attn = jax.nn.softmax(dp, axis=-1)
    wa = jnp.einsum("bhqk,bhkd->bhqd", attn, v)
    wa = wa.transpose(0, 2, 1, 3).reshape(B, T, D)
    attn_out = wa @ params["wproj"] + params["bproj"][0]
    x1 = x + attn_out
    return x1 + ln(x1, params["g2"], params["b2"])


if __name__ == "__main__":
    B, T, D = 2, 8, 32
    n_heads = 4

    key = jax.random.PRNGKey(0)
    k_x, k_qw, k_qb, k_pw, k_pb = jax.random.split(key, 5)

    x = jax.random.normal(k_x, (B, T, D), dtype=jnp.float32)

    # PyTorch Linear stores (out, in); initialize that way then transpose to (in, out).
    wqkv_t = jax.random.normal(k_qw, (3 * D, D), dtype=jnp.float32) * 0.05
    bqkv = jax.random.normal(k_qb, (3 * D,), dtype=jnp.float32) * 0.05
    wproj_t = jax.random.normal(k_pw, (D, D), dtype=jnp.float32) * 0.05
    bproj = jax.random.normal(k_pb, (D,), dtype=jnp.float32) * 0.05

    params = {
        "g1": jnp.ones((1, D), jnp.float32),
        "b1": jnp.zeros((1, D), jnp.float32),
        "wqkv": wqkv_t.T,                       # (D, 3D)
        "bqkv": bqkv.reshape(1, 3 * D),
        "wproj": wproj_t.T,                     # (D, D)
        "bproj": bproj.reshape(1, D),
        "g2": jnp.ones((1, D), jnp.float32),
        "b2": jnp.zeros((1, D), jnp.float32),
    }

    prepared = prepare_params(params, n_heads=n_heads)   # one-time prep (bf16 casts, packing)

    out = vit_block_forward(x, prepared, n_heads=n_heads)
    out = jax.block_until_ready(out)

    ref = reference_forward(x, params, n_heads=n_heads)
    assert out.shape == (B, T, D)
    max_err = float(jnp.max(jnp.abs(out - ref)))
    # bf16 MXU operands -> compare with a bf16-appropriate tolerance.
    assert jnp.allclose(out, ref, atol=3e-2, rtol=3e-2), \
        f"mismatch vs reference, max abs err={max_err}"

    print("KERNEL_OK")
</pallas_src>

<mosaic_0001>
module attributes {stable_mosaic.version = 11 : i64} {
  func.func @_block_kernel(%arg0: i32, %arg1: memref<1x8x32xf32, #tpu.memory_space<vmem>>, %arg2: memref<8x32xf32, #tpu.memory_space<vmem>>, %arg3: memref<32x96xbf16, #tpu.memory_space<vmem>>, %arg4: memref<1x96xf32, #tpu.memory_space<vmem>>, %arg5: memref<32x32xbf16, #tpu.memory_space<vmem>>, %arg6: memref<1x8x32xf32, #tpu.memory_space<vmem>>, %arg7: memref<8x32xbf16, #tpu.memory_space<vmem>>) attributes {dimension_semantics = [#tpu.dimension_semantics<parallel>], iteration_bounds = array<i64: 2>, scalar_prefetch = 0 : i64, scratch_operands = 1 : i64, tpu.core_type = #tpu.core_type<tc>, window_params = [{transform_indices = @transform_0, window_bounds = array<i64: 1, 8, 32>}, {pipeline_mode = #tpu.pipeline_mode<synchronous>, transform_indices = @transform_1, window_bounds = array<i64: 8, 32>}, {pipeline_mode = #tpu.pipeline_mode<synchronous>, transform_indices = @transform_2, window_bounds = array<i64: 32, 96>}, {pipeline_mode = #tpu.pipeline_mode<synchronous>, transform_indices = @transform_3, window_bounds = array<i64: 1, 96>}, {pipeline_mode = #tpu.pipeline_mode<synchronous>, transform_indices = @transform_4, window_bounds = array<i64: 32, 32>}, {transform_indices = @transform_5, window_bounds = array<i64: 1, 8, 32>}]} {
    %c0 = arith.constant 0 : index
    %c0_0 = arith.constant 0 : index
    %c0_1 = arith.constant 0 : index
    %0 = vector.load %arg1[%c0, %c0_0, %c0_1] : memref<1x8x32xf32, #tpu.memory_space<vmem>>, vector<1x8x32xf32>
    %1 = vector.shape_cast %0 : vector<1x8x32xf32> to vector<8x32xf32>
    %c0_2 = arith.constant 0 : index
    %c0_3 = arith.constant 0 : index
    %2 = vector.load %arg2[%c0_2, %c0_3] : memref<8x32xf32, #tpu.memory_space<vmem>>, vector<8x32xf32>
    %3 = vector.extract_strided_slice %2 {offsets = [0, 0], sizes = [1, 32], strides = [1, 1]} : vector<8x32xf32> to vector<1x32xf32>
    %4 = vector.extract_strided_slice %2 {offsets = [1, 0], sizes = [1, 32], strides = [1, 1]} : vector<8x32xf32> to vector<1x32xf32>
    %5 = vector.extract_strided_slice %2 {offsets = [2, 0], sizes = [1, 32], strides = [1, 1]} : vector<8x32xf32> to vector<1x32xf32>
    %6 = vector.extract_strided_slice %2 {offsets = [3, 0], sizes = [1, 32], strides = [1, 1]} : vector<8x32xf32> to vector<1x32xf32>
    %7 = vector.extract_strided_slice %2 {offsets = [4, 0], sizes = [1, 32], strides = [1, 1]} : vector<8x32xf32> to vector<1x32xf32>
    %cst = arith.constant dense<0.000000e+00> : vector<8xf32>
    %8 = vector.multi_reduction <add>, %1, %cst [1] : vector<8x32xf32> to vector<8xf32>
    %9 = vector.shape_cast %8 : vector<8xf32> to vector<8x1xf32>
    %cst_4 = arith.constant 3.200000e+01 : f32
    %10 = vector.broadcast %cst_4 : f32 to vector<8x1xf32>
    %11 = arith.divf %9, %10 : vector<8x1xf32>
    %12 = vector.broadcast %11 : vector<8x1xf32> to vector<8x32xf32>
    %13 = arith.subf %1, %12 : vector<8x32xf32>
    %14 = arith.mulf %13, %13 : vector<8x32xf32>
    %cst_5 = arith.constant dense<0.000000e+00> : vector<8xf32>
    %15 = vector.multi_reduction <add>, %14, %cst_5 [1] : vector<8x32xf32> to vector<8xf32>
    %16 = vector.shape_cast %15 : vector<8xf32> to vector<8x1xf32>
    %cst_6 = arith.constant 3.200000e+01 : f32
    %17 = vector.broadcast %cst_6 : f32 to vector<8x1xf32>
    %18 = arith.divf %16, %17 : vector<8x1xf32>
    %19 = vector.broadcast %11 : vector<8x1xf32> to vector<8x32xf32>
    %20 = arith.subf %1, %19 : vector<8x32xf32>
    %cst_7 = arith.constant 9.99999997E-7 : f32
    %21 = vector.broadcast %cst_7 : f32 to vector<8x1xf32>
    %22 = arith.addf %18, %21 : vector<8x1xf32>
    %23 = math.rsqrt %22 : vector<8x1xf32>
    %24 = vector.broadcast %23 : vector<8x1xf32> to vector<8x32xf32>
    %25 = arith.mulf %20, %24 : vector<8x32xf32>
    %26 = vector.broadcast %3 : vector<1x32xf32> to vector<8x32xf32>
    %27 = arith.mulf %25, %26 : vector<8x32xf32>
    %28 = vector.broadcast %4 : vector<1x32xf32> to vector<8x32xf32>
    %29 = arith.addf %27, %28 : vector<8x32xf32>
    %30 = arith.truncf %29 : vector<8x32xf32> to vector<8x32xbf16>
    %c0_8 = arith.constant 0 : index
    %c0_9 = arith.constant 0 : index
    %31 = vector.load %arg3[%c0_8, %c0_9] : memref<32x96xbf16, #tpu.memory_space<vmem>>, vector<32x96xbf16>
    %cst_10 = arith.constant dense<0.000000e+00> : vector<8x96xf32>
    %32 = tpu.matmul %30, %31, %cst_10 {dimension_numbers = #tpu.dot_dimension_numbers<[1], [0], [0], [1], [0, 0, 1, 1], [], []>} : vector<8x32xbf16>, vector<32x96xbf16>, vector<8x96xf32> -> vector<8x96xf32>
    %c0_11 = arith.constant 0 : index
    %c0_12 = arith.constant 0 : index
    %33 = vector.load %arg4[%c0_11, %c0_12] : memref<1x96xf32, #tpu.memory_space<vmem>>, vector<1x96xf32>
    %34 = vector.broadcast %33 : vector<1x96xf32> to vector<8x96xf32>
    %35 = arith.addf %32, %34 : vector<8x96xf32>
    %36 = vector.extract_strided_slice %35 {offsets = [0, 0], sizes = [8, 8], strides = [1, 1]} : vector<8x96xf32> to vector<8x8xf32>
    %37 = arith.truncf %36 : vector<8x8xf32> to vector<8x8xbf16>
    %38 = vector.extract_strided_slice %35 {offsets = [0, 32], sizes = [8, 8], strides = [1, 1]} : vector<8x96xf32> to vector<8x8xf32>
    %39 = arith.truncf %38 : vector<8x8xf32> to vector<8x8xbf16>
    %40 = vector.extract_strided_slice %35 {offsets = [0, 64], sizes = [8, 8], strides = [1, 1]} : vector<8x96xf32> to vector<8x8xf32>
    %41 = arith.truncf %40 : vector<8x8xf32> to vector<8x8xbf16>
    %cst_13 = arith.constant dense<0.000000e+00> : vector<8x8xf32>
    %42 = tpu.matmul %37, %39, %cst_13 {dimension_numbers = #tpu.dot_dimension_numbers<[1], [1], [0], [0], [0, 0, 1, 0], [], []>} : vector<8x8xbf16>, vector<8x8xbf16>, vector<8x8xf32> -> vector<8x8xf32>
    %cst_14 = arith.constant dense<0xFF800000> : vector<8xf32>
    %43 = vector.multi_reduction <maximumf>, %42, %cst_14 [1] : vector<8x8xf32> to vector<8xf32>
    %44 = vector.shape_cast %43 : vector<8xf32> to vector<8x1xf32>
    %45 = vector.broadcast %44 : vector<8x1xf32> to vector<8x8xf32>
    %46 = arith.subf %42, %45 : vector<8x8xf32>
    %47 = math.exp %46 : vector<8x8xf32>
    %cst_15 = arith.constant dense<0.000000e+00> : vector<8xf32>
    %48 = vector.multi_reduction <add>, %47, %cst_15 [1] : vector<8x8xf32> to vector<8xf32>
    %49 = vector.shape_cast %48 : vector<8xf32> to vector<8x1xf32>
    %50 = tpu.reciprocal %49 : vector<8x1xf32> -> vector<8x1xf32>
    %51 = vector.broadcast %50 : vector<8x1xf32> to vector<8x8xf32>
    %52 = arith.mulf %47, %51 : vector<8x8xf32>
    %53 = arith.truncf %52 : vector<8x8xf32> to vector<8x8xbf16>
    %cst_16 = arith.constant dense<0.000000e+00> : vector<8x8xf32>
    %54 = tpu.matmul %53, %41, %cst_16 {dimension_numbers = #tpu.dot_dimension_numbers<[1], [0], [0], [1], [0, 0, 1, 1], [], []>} : vector<8x8xbf16>, vector<8x8xbf16>, vector<8x8xf32> -> vector<8x8xf32>
    %55 = arith.truncf %54 : vector<8x8xf32> to vector<8x8xbf16>
    %c0_17 = arith.constant 0 : index
    %c0_18 = arith.constant 0 : index
    %56 = vector.load %arg7[%c0_17, %c0_18] : memref<8x32xbf16, #tpu.memory_space<vmem>>, vector<8x8xbf16>
    tpu.vector_store %arg7[%c0_17, %c0_18], %55 {strides = array<i32>} : memref<8x32xbf16, #tpu.memory_space<vmem>>, vector<8x8xbf16>,
    %57 = vector.extract_strided_slice %35 {offsets = [0, 8], sizes = [8, 8], strides = [1, 1]} : vector<8x96xf32> to vector<8x8xf32>
    %58 = arith.truncf %57 : vector<8x8xf32> to vector<8x8xbf16>
    %59 = vector.extract_strided_slice %35 {offsets = [0, 40], sizes = [8, 8], strides = [1, 1]} : vector<8x96xf32> to vector<8x8xf32>
    %60 = arith.truncf %59 : vector<8x8xf32> to vector<8x8xbf16>
    %61 = vector.extract_strided_slice %35 {offsets = [0, 72], sizes = [8, 8], strides = [1, 1]} : vector<8x96xf32> to vector<8x8xf32>
    %62 = arith.truncf %61 : vector<8x8xf32> to vector<8x8xbf16>
    %cst_19 = arith.constant dense<0.000000e+00> : vector<8x8xf32>
    %63 = tpu.matmul %58, %60, %cst_19 {dimension_numbers = #tpu.dot_dimension_numbers<[1], [1], [0], [0], [0, 0, 1, 0], [], []>} : vector<8x8xbf16>, vector<8x8xbf16>, vector<8x8xf32> -> vector<8x8xf32>
    %cst_20 = arith.constant dense<0xFF800000> : vector<8xf32>
    %64 = vector.multi_reduction <maximumf>, %63, %cst_20 [1] : vector<8x8xf32> to vector<8xf32>
    %65 = vector.shape_cast %64 : vector<8xf32> to vector<8x1xf32>
    %66 = vector.broadcast %65 : vector<8x1xf32> to vector<8x8xf32>
    %67 = arith.subf %63, %66 : vector<8x8xf32>
    %68 = math.exp %67 : vector<8x8xf32>
    %cst_21 = arith.constant dense<0.000000e+00> : vector<8xf32>
    %69 = vector.multi_reduction <add>, %68, %cst_21 [1] : vector<8x8xf32> to vector<8xf32>
    %70 = vector.shape_cast %69 : vector<8xf32> to vector<8x1xf32>
    %71 = tpu.reciprocal %70 : vector<8x1xf32> -> vector<8x1xf32>
    %72 = vector.broadcast %71 : vector<8x1xf32> to vector<8x8xf32>
    %73 = arith.mulf %68, %72 : vector<8x8xf32>
    %74 = arith.truncf %73 : vector<8x8xf32> to vector<8x8xbf16>
    %cst_22 = arith.constant dense<0.000000e+00> : vector<8x8xf32>
    %75 = tpu.matmul %74, %62, %cst_22 {dimension_numbers = #tpu.dot_dimension_numbers<[1], [0], [0], [1], [0, 0, 1, 1], [], []>} : vector<8x8xbf16>, vector<8x8xbf16>, vector<8x8xf32> -> vector<8x8xf32>
    %76 = arith.truncf %75 : vector<8x8xf32> to vector<8x8xbf16>
    %c0_23 = arith.constant 0 : index
    %c8 = arith.constant 8 : index
    %77 = vector.load %arg7[%c0_23, %c8] : memref<8x32xbf16, #tpu.memory_space<vmem>>, vector<8x8xbf16>
    tpu.vector_store %arg7[%c0_23, %c8], %76 {strides = array<i32>} : memref<8x32xbf16, #tpu.memory_space<vmem>>, vector<8x8xbf16>,
    %78 = vector.extract_strided_slice %35 {offsets = [0, 16], sizes = [8, 8], strides = [1, 1]} : vector<8x96xf32> to vector<8x8xf32>
    %79 = arith.truncf %78 : vector<8x8xf32> to vector<8x8xbf16>
    %80 = vector.extract_strided_slice %35 {offsets = [0, 48], sizes = [8, 8], strides = [1, 1]} : vector<8x96xf32> to vector<8x8xf32>
    %81 = arith.truncf %80 : vector<8x8xf32> to vector<8x8xbf16>
    %82 = vector.extract_strided_slice %35 {offsets = [0, 80], sizes = [8, 8], strides = [1, 1]} : vector<8x96xf32> to vector<8x8xf32>
    %83 = arith.truncf %82 : vector<8x8xf32> to vector<8x8xbf16>
    %cst_24 = arith.constant dense<0.000000e+00> : vector<8x8xf32>
    %84 = tpu.matmul %79, %81, %cst_24 {dimension_numbers = #tpu.dot_dimension_numbers<[1], [1], [0], [0], [0, 0, 1, 0], [], []>} : vector<8x8xbf16>, vector<8x8xbf16>, vector<8x8xf32> -> vector<8x8xf32>
    %cst_25 = arith.constant dense<0xFF800000> : vector<8xf32>
    %85 = vector.multi_reduction <maximumf>, %84, %cst_25 [1] : vector<8x8xf32> to vector<8xf32>
    %86 = vector.shape_cast %85 : vector<8xf32> to vector<8x1xf32>
    %87 = vector.broadcast %86 : vector<8x1xf32> to vector<8x8xf32>
    %88 = arith.subf %84, %87 : vector<8x8xf32>
    %89 = math.exp %88 : vector<8x8xf32>
    %cst_26 = arith.constant dense<0.000000e+00> : vector<8xf32>
    %90 = vector.multi_reduction <add>, %89, %cst_26 [1] : vector<8x8xf32> to vector<8xf32>
    %91 = vector.shape_cast %90 : vector<8xf32> to vector<8x1xf32>
    %92 = tpu.reciprocal %91 : vector<8x1xf32> -> vector<8x1xf32>
    %93 = vector.broadcast %92 : vector<8x1xf32> to vector<8x8xf32>
    %94 = arith.mulf %89, %93 : vector<8x8xf32>
    %95 = arith.truncf %94 : vector<8x8xf32> to vector<8x8xbf16>
    %cst_27 = arith.constant dense<0.000000e+00> : vector<8x8xf32>
    %96 = tpu.matmul %95, %83, %cst_27 {dimension_numbers = #tpu.dot_dimension_numbers<[1], [0], [0], [1], [0, 0, 1, 1], [], []>} : vector<8x8xbf16>, vector<8x8xbf16>, vector<8x8xf32> -> vector<8x8xf32>
    %97 = arith.truncf %96 : vector<8x8xf32> to vector<8x8xbf16>
    %c0_28 = arith.constant 0 : index
    %c16 = arith.constant 16 : index
    %98 = vector.load %arg7[%c0_28, %c16] : memref<8x32xbf16, #tpu.memory_space<vmem>>, vector<8x8xbf16>
    tpu.vector_store %arg7[%c0_28, %c16], %97 {strides = array<i32>} : memref<8x32xbf16, #tpu.memory_space<vmem>>, vector<8x8xbf16>,
    %99 = vector.extract_strided_slice %35 {offsets = [0, 24], sizes = [8, 8], strides = [1, 1]} : vector<8x96xf32> to vector<8x8xf32>
    %100 = arith.truncf %99 : vector<8x8xf32> to vector<8x8xbf16>
    %101 = vector.extract_strided_slice %35 {offsets = [0, 56], sizes = [8, 8], strides = [1, 1]} : vector<8x96xf32> to vector<8x8xf32>
    %102 = arith.truncf %101 : vector<8x8xf32> to vector<8x8xbf16>
    %103 = vector.extract_strided_slice %35 {offsets = [0, 88], sizes = [8, 8], strides = [1, 1]} : vector<8x96xf32> to vector<8x8xf32>
    %104 = arith.truncf %103 : vector<8x8xf32> to vector<8x8xbf16>
    %cst_29 = arith.constant dense<0.000000e+00> : vector<8x8xf32>
    %105 = tpu.matmul %100, %102, %cst_29 {dimension_numbers = #tpu.dot_dimension_numbers<[1], [1], [0], [0], [0, 0, 1, 0], [], []>} : vector<8x8xbf16>, vector<8x8xbf16>, vector<8x8xf32> -> vector<8x8xf32>
    %cst_30 = arith.constant dense<0xFF800000> : vector<8xf32>
    %106 = vector.multi_reduction <maximumf>, %105, %cst_30 [1] : vector<8x8xf32> to vector<8xf32>
    %107 = vector.shape_cast %106 : vector<8xf32> to vector<8x1xf32>
    %108 = vector.broadcast %107 : vector<8x1xf32> to vector<8x8xf32>
    %109 = arith.subf %105, %108 : vector<8x8xf32>
    %110 = math.exp %109 : vector<8x8xf32>
    %cst_31 = arith.constant dense<0.000000e+00> : vector<8xf32>
    %111 = vector.multi_reduction <add>, %110, %cst_31 [1] : vector<8x8xf32> to vector<8xf32>
    %112 = vector.shape_cast %111 : vector<8xf32> to vector<8x1xf32>
    %113 = tpu.reciprocal %112 : vector<8x1xf32> -> vector<8x1xf32>
    %114 = vector.broadcast %113 : vector<8x1xf32> to vector<8x8xf32>
    %115 = arith.mulf %110, %114 : vector<8x8xf32>
    %116 = arith.truncf %115 : vector<8x8xf32> to vector<8x8xbf16>
    %cst_32 = arith.constant dense<0.000000e+00> : vector<8x8xf32>
    %117 = tpu.matmul %116, %104, %cst_32 {dimension_numbers = #tpu.dot_dimension_numbers<[1], [0], [0], [1], [0, 0, 1, 1], [], []>} : vector<8x8xbf16>, vector<8x8xbf16>, vector<8x8xf32> -> vector<8x8xf32>
    %118 = arith.truncf %117 : vector<8x8xf32> to vector<8x8xbf16>
    %c0_33 = arith.constant 0 : index
    %c24 = arith.constant 24 : index
    %119 = vector.load %arg7[%c0_33, %c24] : memref<8x32xbf16, #tpu.memory_space<vmem>>, vector<8x8xbf16>
    tpu.vector_store %arg7[%c0_33, %c24], %118 {strides = array<i32>} : memref<8x32xbf16, #tpu.memory_space<vmem>>, vector<8x8xbf16>,
    %c0_34 = arith.constant 0 : index
    %c0_35 = arith.constant 0 : index
    %120 = vector.load %arg7[%c0_34, %c0_35] : memref<8x32xbf16, #tpu.memory_space<vmem>>, vector<8x32xbf16>
    %c0_36 = arith.constant 0 : index
    %c0_37 = arith.constant 0 : index
    %121 = vector.load %arg5[%c0_36, %c0_37] : memref<32x32xbf16, #tpu.memory_space<vmem>>, vector<32x32xbf16>
    %cst_38 = arith.constant dense<0.000000e+00> : vector<8x32xf32>
    %122 = tpu.matmul %120, %121, %cst_38 {dimension_numbers = #tpu.dot_dimension_numbers<[1], [0], [0], [1], [0, 0, 1, 1], [], []>} : vector<8x32xbf16>, vector<32x32xbf16>, vector<8x32xf32> -> vector<8x32xf32>
    %123 = vector.broadcast %7 : vector<1x32xf32> to vector<8x32xf32>
    %124 = arith.addf %122, %123 : vector<8x32xf32>
    %125 = arith.addf %1, %124 : vector<8x32xf32>
    %cst_39 = arith.constant dense<0.000000e+00> : vector<8xf32>
    %126 = vector.multi_reduction <add>, %125, %cst_39 [1] : vector<8x32xf32> to vector<8xf32>
    %127 = vector.shape_cast %126 : vector<8xf32> to vector<8x1xf32>
    %cst_40 = arith.constant 3.200000e+01 : f32
    %128 = vector.broadcast %cst_40 : f32 to vector<8x1xf32>
    %129 = arith.divf %127, %128 : vector<8x1xf32>
    %130 = vector.broadcast %129 : vector<8x1xf32> to vector<8x32xf32>
    %131 = arith.subf %125, %130 : vector<8x32xf32>
    %132 = arith.mulf %131, %131 : vector<8x32xf32>
    %cst_41 = arith.constant dense<0.000000e+00> : vector<8xf32>
    %133 = vector.multi_reduction <add>, %132, %cst_41 [1] : vector<8x32xf32> to vector<8xf32>
    %134 = vector.shape_cast %133 : vector<8xf32> to vector<8x1xf32>
    %cst_42 = arith.constant 3.200000e+01 : f32
    %135 = vector.broadcast %cst_42 : f32 to vector<8x1xf32>
    %136 = arith.divf %134, %135 : vector<8x1xf32>
    %137 = vector.broadcast %129 : vector<8x1xf32> to vector<8x32xf32>
    %138 = arith.subf %125, %137 : vector<8x32xf32>
    %cst_43 = arith.constant 9.99999997E-7 : f32
    %139 = vector.broadcast %cst_43 : f32 to vector<8x1xf32>
    %140 = arith.addf %136, %139 : vector<8x1xf32>
    %141 = math.rsqrt %140 : vector<8x1xf32>
    %142 = vector.broadcast %141 : vector<8x1xf32> to vector<8x32xf32>
    %143 = arith.mulf %138, %142 : vector<8x32xf32>
    %144 = vector.broadcast %5 : vector<1x32xf32> to vector<8x32xf32>
    %145 = arith.mulf %143, %144 : vector<8x32xf32>
    %146 = vector.broadcast %6 : vector<1x32xf32> to vector<8x32xf32>
    %147 = arith.addf %145, %146 : vector<8x32xf32>
    %148 = arith.addf %125, %147 : vector<8x32xf32>
    %149 = vector.shape_cast %148 : vector<8x32xf32> to vector<1x8x32xf32>
    %c0_44 = arith.constant 0 : index
    %c0_45 = arith.constant 0 : index
    %c0_46 = arith.constant 0 : index
    %150 = vector.load %arg6[%c0_44, %c0_45, %c0_46] : memref<1x8x32xf32, #tpu.memory_space<vmem>>, vector<1x8x32xf32>
    tpu.vector_store %arg6[%c0_44, %c0_45, %c0_46], %149 {strides = array<i32>} : memref<1x8x32xf32, #tpu.memory_space<vmem>>, vector<1x8x32xf32>,
    return
  }
  func.func @transform_0(%arg0: i32) -> (i32, i32, i32) {
    %c0_i32 = arith.constant 0 : i32
    %c0_i32_0 = arith.constant 0 : i32
    %c0_i32_1 = arith.constant 0 : i32
    return %arg0, %c0_i32, %c0_i32_0 : i32, i32, i32
  }
  func.func @transform_1(%arg0: i32) -> (i32, i32) {
    %c0_i32 = arith.constant 0 : i32
    %c0_i32_0 = arith.constant 0 : i32
    %c0_i32_1 = arith.constant 0 : i32
    return %c0_i32, %c0_i32_0 : i32, i32
  }
  func.func @transform_2(%arg0: i32) -> (i32, i32) {
    %c0_i32 = arith.constant 0 : i32
    %c0_i32_0 = arith.constant 0 : i32
    %c0_i32_1 = arith.constant 0 : i32
    return %c0_i32, %c0_i32_0 : i32, i32
  }
  func.func @transform_3(%arg0: i32) -> (i32, i32) {
    %c0_i32 = arith.constant 0 : i32
    %c0_i32_0 = arith.constant 0 : i32
    %c0_i32_1 = arith.constant 0 : i32
    return %c0_i32, %c0_i32_0 : i32, i32
  }
  func.func @transform_4(%arg0: i32) -> (i32, i32) {
    %c0_i32 = arith.constant 0 : i32
    %c0_i32_0 = arith.constant 0 : i32
    %c0_i32_1 = arith.constant 0 : i32
    return %c0_i32, %c0_i32_0 : i32, i32
  }
  func.func @transform_5(%arg0: i32) -> (i32, i32, i32) {
    %c0_i32 = arith.constant 0 : i32
    %c0_i32_0 = arith.constant 0 : i32
    %c0_i32_1 = arith.constant 0 : i32
    return %arg0, %c0_i32, %c0_i32_0 : i32, i32, i32
  }
}

</mosaic_0001>

<llo_original>
// kernel: tpu_custom_call.1
$region0: #{tpu_custom_call.1}
  #allocation0 [shape = 'u32[]', space=smem, size = 0x4, offset = 0x4, fixed_abs, tag = 'smem constant byte address 0x4 - core index']
  #allocation1 [shape = 'u32[72,128]{1,0:T(1,128)}', space=vmem, size = 0x9000, scoped, tag = 'internal scratch']
  #allocation2 [shape = 'bf16[8,32]{1,0:T(8,128)(2,1)}', space=vmem, size = 0x800, scoped, tag = 'scratch operand']
  %s0 = inlined_call_operand.hbm [shape: f32[2,8,32], index: 0, kind: input, shape index: {}]
  %s1 = inlined_call_operand.hbm [shape: f32[8,32], index: 1, kind: input, shape index: {}]
  %s2 = inlined_call_operand.hbm [shape: bf16[32,96], index: 2, kind: input, shape index: {}]
  %s3 = inlined_call_operand.vmem [shape: f32[1,96], index: 3, kind: input, shape index: {}]
  %s4 = inlined_call_operand.hbm [shape: bf16[32,32], index: 4, kind: input, shape index: {}]
  %s5 = inlined_call_operand.hbm [shape: f32[2,8,32], index: 5, kind: output, shape index: {}]
  %s6 = sld [smem:[#allocation0]]
  $region69: #{tpu_custom_call.1} parent=0
    _
  %s8 = ssub.s32 1, %s6
  %s9 = scalar_select 0, %s8, %s6
  $region1: #{tpu_custom_call.1} parent=0
    #allocation3 [shape = 'u8[8192]{0}', space=vmem, size = 0x2000, scoped, tag = 'input window, operand 0']
    #allocation4 [shape = 's32[2]{0}', space=sflag, size = 0x8, scoped, tag = 'scoped memory for tpu_custom_call.1']
    #allocation5 [shape = 's32[2]{0}', space=sflag, size = 0x8, scoped, tag = 'scoped memory for tpu_custom_call.1']
    #allocation6 [shape = 'u8[4096]{0}', space=vmem, size = 0x1000, scoped, tag = 'input window, operand 1, single buffered']
    #allocation7 [shape = 's32[1]{0}', space=sflag, size = 0x4, scoped, tag = 'scoped memory for tpu_custom_call.1']
    #allocation8 [shape = 'u8[8192]{0}', space=vmem, size = 0x2000, scoped, tag = 'input window, operand 2, single buffered']
    #allocation9 [shape = 'u8[8192]{0}', space=vmem, size = 0x2000, scoped, tag = 'input window, operand 4, single buffered']
    #allocation10 [shape = 's32[1]{0}', space=sflag, size = 0x4, scoped, tag = 'scoped memory for tpu_custom_call.1']
    #allocation11 [shape = 'u8[8192]{0}', space=vmem, size = 0x2000, scoped, tag = 'output window, operand 0']
    %10 = vsyncpa [#allocation4], 0
    %s11 = scalar_lea.sflag [#allocation4], 1
    %12 = vsyncpa %s11, 0
    %13 = vsyncpa [#allocation7], 0
    %14 = vsyncpa [#allocation10], 0
    %15 = vsyncpa [#allocation5], 0
    %s16 = scalar_lea.sflag [#allocation5], 1
    %17 = vsyncpa %s16, 0
    loop: start=0, step=1, limit=4
    $region2: #{tpu_custom_call.1} parent=1 // loop_pre_header
      _
    $region3: #{tpu_custom_call.1} parent=1 // loop_header
      %s19 = sphi 0, %s23
      %p20 = scmp.ge.s32.totalorder %s19, 4
      %s29 = sphi 0, %s31
      %s32 = sphi 0, %s29
      %s33 = sphi 0, %s32
      %s49 = sphi 0, %s33
      %s53 = sphi 0, %s53
      %s55 = sphi 0, %s53
      %s56 = sphi 0, %s55
      %s70 = sphi 0, %s56
      %s74 = sphi 0, %s74
      %s76 = sphi 0, %s74
      %s77 = sphi 0, %s76
      %s91 = sphi 0, %s77
      %s95 = sphi 0, %s95
      %s97 = sphi 0, %s95
      %s98 = sphi 0, %s97
      %s112 = sphi 0, %s98
      %s116 = sphi 0, %s116
      %s118 = sphi 0, %s116
      %s119 = sphi 0, %s118
      %s133 = sphi 0, %s119
      %s139 = sphi 0, %s141
      %s142 = sphi 0, %s139
      %s143 = sphi 0, %s142
      %s159 = sphi 0, %s143
    $region4: #{tpu_custom_call.1} parent=1 // loop_header_branch
      %22 = sbr.rel (%p20) target = $region8
    $region5: #{tpu_custom_call.1} parent=1 // loop_body
      %s24 = ssub.s32 %s19, 1
      %s25 = ssub.s32 %s19, 2
      %s26 = sadd.s32 %s19, 1
      %s27 = ssub.s32 %s19, %s26
      %p28 = scmp.eq.s32.totalorder %s27, 0
      %s30 = sadd.s32 %s29, 1
      %s31 = scalar_select %p28, %s29, %s30
      %p34 = pneg %p28
      %p35 = scmp.eq.s32.totalorder %s19, 1
      %p36 = por %p34, %p35
      %p37 = scmp.ne.s32.totalorder %s29, %s32
      %p38 = scmp.eq.s32.totalorder %s19, 0
      %p39 = por %p37, %p38
      %p40 = scmp.ne.s32.totalorder %s29, %s32
      %p41 = scmp.eq.s32.totalorder %s24, 1
      %p42 = por %p40, %p41
      %p43 = scmp.ne.s32.totalorder %s32, %s33
      %p44 = scmp.eq.s32.totalorder %s24, 0
      %p45 = por %p43, %p44
      %p46 = scmp.ne.s32.totalorder %s32, %s33
      %p47 = scmp.eq.s32.totalorder %s25, 1
      %p48 = por %p46, %p47
      %p50 = scmp.ne.s32.totalorder %s33, %s49
      %p51 = scmp.eq.s32.totalorder %s25, 0
      %p52 = por %p50, %p51
      %s54 = sadd.s32 %s53, 1
      %p57 = scmp.eq.s32.totalorder %s19, 1
      %p58 = scmp.ne.s32.totalorder %s53, %s55
      %p59 = scmp.eq.s32.totalorder %s19, 0
      %p60 = por %p58, %p59
      %p61 = scmp.ne.s32.totalorder %s53, %s55
      %p62 = scmp.eq.s32.totalorder %s24, 1
      %p63 = por %p61, %p62
      %p64 = scmp.ne.s32.totalorder %s55, %s56
      %p65 = scmp.eq.s32.totalorder %s24, 0
      %p66 = por %p64, %p65
      %p67 = scmp.ne.s32.totalorder %s55, %s56
      %p68 = scmp.eq.s32.totalorder %s25, 1
      %p69 = por %p67, %p68
      %p71 = scmp.ne.s32.totalorder %s56, %s70
      %p72 = scmp.eq.s32.totalorder %s25, 0
      %p73 = por %p71, %p72
      %s75 = sadd.s32 %s74, 1
      %p78 = scmp.eq.s32.totalorder %s19, 1
      %p79 = scmp.ne.s32.totalorder %s74, %s76
      %p80 = scmp.eq.s32.totalorder %s19, 0
      %p81 = por %p79, %p80
      %p82 = scmp.ne.s32.totalorder %s74, %s76
      %p83 = scmp.eq.s32.totalorder %s24, 1
      %p84 = por %p82, %p83
      %p85 = scmp.ne.s32.totalorder %s76, %s77
      %p86 = scmp.eq.s32.totalorder %s24, 0
      %p87 = por %p85, %p86
      %p88 = scmp.ne.s32.totalorder %s76, %s77
      %p89 = scmp.eq.s32.totalorder %s25, 1
      %p90 = por %p88, %p89
      %p92 = scmp.ne.s32.totalorder %s77, %s91
      %p93 = scmp.eq.s32.totalorder %s25, 0
      %p94 = por %p92, %p93
      %s96 = sadd.s32 %s95, 1
      %p99 = scmp.eq.s32.totalorder %s19, 1
      %p100 = scmp.ne.s32.totalorder %s95, %s97
      %p101 = scmp.eq.s32.totalorder %s19, 0
      %p102 = por %p100, %p101
      %p103 = scmp.ne.s32.totalorder %s95, %s97
      %p104 = scmp.eq.s32.totalorder %s24, 1
      %p105 = por %p103, %p104
      %p106 = scmp.ne.s32.totalorder %s97, %s98
      %p107 = scmp.eq.s32.totalorder %s24, 0
      %p108 = por %p106, %p107
      %p109 = scmp.ne.s32.totalorder %s97, %s98
      %p110 = scmp.eq.s32.totalorder %s25, 1
      %p111 = por %p109, %p110
      %p113 = scmp.ne.s32.totalorder %s98, %s112
      %p114 = scmp.eq.s32.totalorder %s25, 0
      %p115 = por %p113, %p114
      %s117 = sadd.s32 %s116, 1
      %p120 = scmp.eq.s32.totalorder %s19, 1
      %p121 = scmp.ne.s32.totalorder %s116, %s118
      %p122 = scmp.eq.s32.totalorder %s19, 0
      %p123 = por %p121, %p122
      %p124 = scmp.ne.s32.totalorder %s116, %s118
      %p125 = scmp.eq.s32.totalorder %s24, 1
      %p126 = por %p124, %p125
      %p127 = scmp.ne.s32.totalorder %s118, %s119
      %p128 = scmp.eq.s32.totalorder %s24, 0
      %p129 = por %p127, %p128
      %p130 = scmp.ne.s32.totalorder %s118, %s119
      %p131 = scmp.eq.s32.totalorder %s25, 1
      %p132 = por %p130, %p131
      %p134 = scmp.ne.s32.totalorder %s119, %s133
      %p135 = scmp.eq.s32.totalorder %s25, 0
      %p136 = por %p134, %p135
      %s137 = ssub.s32 %s19, %s26
      %p138 = scmp.eq.s32.totalorder %s137, 0
      %s140 = sadd.s32 %s139, 1
      %s141 = scalar_select %p138, %s139, %s140
      %p144 = pneg %p138
      %p145 = scmp.eq.s32.totalorder %s19, 1
      %p146 = por %p144, %p145
      %p147 = scmp.ne.s32.totalorder %s139, %s142
      %p148 = scmp.eq.s32.totalorder %s19, 0
      %p149 = por %p147, %p148
      %p150 = scmp.ne.s32.totalorder %s139, %s142
      %p151 = scmp.eq.s32.totalorder %s24, 1
      %p152 = por %p150, %p151
      %p153 = scmp.ne.s32.totalorder %s142, %s143
      %p154 = scmp.eq.s32.totalorder %s24, 0
      %p155 = por %p153, %p154
      %p156 = scmp.ne.s32.totalorder %s142, %s143
      %p157 = scmp.eq.s32.totalorder %s25, 1
      %p158 = por %p156, %p157
      %p160 = scmp.ne.s32.totalorder %s143, %s159
      %p161 = scmp.eq.s32.totalorder %s25, 0
      %p162 = por %p160, %p161
      %p163 = scmp.le.s32.totalorder 1, %s19
      %p164 = scmp.lt.s32.totalorder %s19, 3
      %p165 = pnand %p163, %p164
      %p166 = pneg %p165
      // Predicated region
      $region9: #{tpu_custom_call.1} parent=5 // pred_check
        _
      $region10: #{tpu_custom_call.1} parent=5 // pred_check_branch
        %168 = sbr.rel (%p165) target = $region12
      $region11: #{tpu_custom_call.1} parent=5 // pred_region
        %s169 = ssub.s32 %s19, 1
        // Predicated region
        $region13: #{tpu_custom_call.1} parent=11 // pred_check
          %p170 = pneg %p66
        $region14: #{tpu_custom_call.1} parent=11 // pred_check_branch
          %172 = sbr.rel (%p170) target = $region16
        $region15: #{tpu_custom_call.1} parent=11 // pred_region
          %174 = vsyncadd [#allocation7], 0
          %s176 = sshll.u32 %s1, 4
          %s177 = int_to_ptr.hbm [resolvable:$true] %s176
          %s178 = sshll.u32 [#allocation6], 4
          %s179 = int_to_ptr.vmem [resolvable:$true] %s178
          %181 = dma.hbm_to_vmem [thread:$0]  %s177, 128, %s179, [#allocation7]
        $region16: #{tpu_custom_call.1} parent=11 // pred_fallthru
          _
        // Predicated region
        $region17: #{tpu_custom_call.1} parent=11 // pred_check
          %p182 = pneg %p87
        $region18: #{tpu_custom_call.1} parent=11 // pred_check_branch
          %184 = sbr.rel (%p182) target = $region20
        $region19: #{tpu_custom_call.1} parent=11 // pred_region
          %186 = vsyncadd [#allocation7], 0
          %s187 = sshll.u32 %s2, 4
          %s188 = int_to_ptr.hbm [resolvable:$true] %s187
          %s189 = sshll.u32 [#allocation8], 4
          %s190 = int_to_ptr.vmem [resolvable:$true] %s189
          %195 = dma.hbm_to_vmem [thread:$0]  %s188, 256, %s190, [#allocation7], 64, 64, 4
        $region20: #{tpu_custom_call.1} parent=11 // pred_fallthru
          _
        // Predicated region
        $region21: #{tpu_custom_call.1} parent=11 // pred_check
          %p196 = pneg %p108
        $region22: #{tpu_custom_call.1} parent=11 // pred_check_branch
          %198 = sbr.rel (%p196) target = $region24
        $region23: #{tpu_custom_call.1} parent=11 // pred_region
          _
        $region24: #{tpu_custom_call.1} parent=11 // pred_fallthru
          _
        // Predicated region
        $region25: #{tpu_custom_call.1} parent=11 // pred_check
          %p199 = pneg %p129
        $region26: #{tpu_custom_call.1} parent=11 // pred_check_branch
          %201 = sbr.rel (%p199) target = $region28
        $region27: #{tpu_custom_call.1} parent=11 // pred_region
          %203 = vsyncadd [#allocation10], 0
          %s204 = sshll.u32 %s4, 4
          %s205 = int_to_ptr.hbm [resolvable:$true] %s204
          %s206 = sshll.u32 [#allocation9], 4
          %s207 = int_to_ptr.vmem [resolvable:$true] %s206
          %212 = dma.hbm_to_vmem [thread:$0]  %s205, 256, %s207, [#allocation10], 64, 64, 4
        $region28: #{tpu_custom_call.1} parent=11 // pred_fallthru
          _
      $region12: #{tpu_custom_call.1} parent=5 // pred_fallthru
        _
      %p213 = scmp.lt.s32.totalorder %s19, 2
      // Predicated region
      $region29: #{tpu_custom_call.1} parent=5 // pred_check
        %p214 = pneg %p213
      $region30: #{tpu_custom_call.1} parent=5 // pred_check_branch
        %216 = sbr.rel (%p214) target = $region32
      $region31: #{tpu_custom_call.1} parent=5 // pred_region
        // Predicated region
        $region33: #{tpu_custom_call.1} parent=31 // pred_check
          %p217 = pneg %p39
        $region34: #{tpu_custom_call.1} parent=31 // pred_check_branch
          %219 = sbr.rel (%p217) target = $region36
        $region35: #{tpu_custom_call.1} parent=31 // pred_region
          %s220 = sand.u32 %s29, 1
          %s221 = scalar_lea.sflag [#allocation4], %s220
          %s222 = sand.u32 %s29, 1
          %s223 = smul.addr %s222, 8
          %s224 = scalar_lea.vmem [#allocation3], %s223
          %226 = vsyncadd %s221, 0
          %s227 = smul.addr %s19, 8
          %s228 = scalar_lea.hbm %s0, %s227
          %s230 = sshll.u32 %s228, 4
          %s231 = int_to_ptr.hbm [resolvable:$true] %s230
          %s232 = sshll.u32 %s224, 4
          %s233 = int_to_ptr.vmem [resolvable:$true] %s232
          %235 = dma.hbm_to_vmem [thread:$0]  %s231, 128, %s233, %s221
        $region36: #{tpu_custom_call.1} parent=31 // pred_fallthru
          _
      $region32: #{tpu_custom_call.1} parent=5 // pred_fallthru
        _
      %p236 = scmp.le.s32.totalorder 1, %s19
      %p237 = scmp.lt.s32.totalorder %s19, 3
      %p238 = pnand %p236, %p237
      %p239 = pneg %p238
      // Predicated region
      $region37: #{tpu_custom_call.1} parent=5 // pred_check
        _
      $region38: #{tpu_custom_call.1} parent=5 // pred_check_branch
        %241 = sbr.rel (%p238) target = $region40
      $region39: #{tpu_custom_call.1} parent=5 // pred_region
        %s242 = ssub.s32 %s19, 1
        %s243 = sand.u32 %s32, 1
        %s244 = scalar_lea.sflag [#allocation4], %s243
        %s245 = sand.u32 %s32, 1
        %s246 = smul.addr %s245, 8
        %s247 = scalar_lea.vmem [#allocation3], %s246
        // Predicated region
        $region41: #{tpu_custom_call.1} parent=39 // pred_check
          %p248 = pneg %p45
        $region42: #{tpu_custom_call.1} parent=39 // pred_check_branch
          %250 = sbr.rel (%p248) target = $region44
        $region43: #{tpu_custom_call.1} parent=39 // pred_region
          %252 = dma.done %s244, 128
        $region44: #{tpu_custom_call.1} parent=39 // pred_fallthru
          _
        // Predicated region
        $region45: #{tpu_custom_call.1} parent=39 // pred_check
          %p253 = pneg %p66
        $region46: #{tpu_custom_call.1} parent=39 // pred_check_branch
          %255 = sbr.rel (%p253) target = $region48
        $region47: #{tpu_custom_call.1} parent=39 // pred_region
          %257 = dma.done [#allocation7], 128
        $region48: #{tpu_custom_call.1} parent=39 // pred_fallthru
          _
        // Predicated region
        $region49: #{tpu_custom_call.1} parent=39 // pred_check
          %p258 = pneg %p87
        $region50: #{tpu_custom_call.1} parent=39 // pred_check_branch
          %260 = sbr.rel (%p258) target = $region52
        $region51: #{tpu_custom_call.1} parent=39 // pred_region
          %262 = dma.done [#allocation7], 256
        $region52: #{tpu_custom_call.1} parent=39 // pred_fallthru
          _
        // Predicated region
        $region53: #{tpu_custom_call.1} parent=39 // pred_check
          %p263 = pneg %p129
        $region54: #{tpu_custom_call.1} parent=39 // pred_check_branch
          %265 = sbr.rel (%p263) target = $region56
        $region55: #{tpu_custom_call.1} parent=39 // pred_region
          %267 = dma.done [#allocation10], 256
        $region56: #{tpu_custom_call.1} parent=39 // pred_fallthru
          _
        %s268 = sand.u32 %s32, 1
        %s269 = scalar_lea.sflag [#allocation4], %s268
        %s270 = sand.u32 %s32, 1
        %s271 = smul.addr %s270, 8
        %s272 = scalar_lea.vmem [#allocation3], %s271
        %p273 = pneg %p45
        %p274 = pneg %p42
        %p275 = pneg %p66
        %p276 = pneg %p63
        %p277 = pneg %p87
        %p278 = pneg %p84
        %p279 = pneg %p108
        %p280 = pneg %p105
        %p281 = pneg %p129
        %p282 = pneg %p126
        %p283 = pneg %p155
        %p284 = pneg %p152
        %s285 = sand.u32 %s142, 1
        %s286 = scalar_lea.sflag [#allocation5], %s285
        %s287 = sand.u32 %s142, 1
        %s288 = smul.addr %s287, 8
        %s289 = scalar_lea.vmem [#allocation11], %s288
        %v291 = vld [vmem:[%s247] sm:$0xff]
        %v292 = vld [vmem:[#allocation6] sm:$0xff]
        %vm293 = vcmask 261120
        %v294 = vsel %vm293, %v291, 0.0
        %295 = vadd.xlane.f32.xlu0 %v294
        %v296 = vpop.xlane.xlu0 %295
        %v297 = vrcp.pop 32.0
        %v298 = vmul.f32 32.0, %v297
        %v299 = vsub.f32 1.0, %v298
        %v300 = vmul.f32 %v297, %v299
        %v301 = vadd.f32 %v297, %v300
        %vm302 = vweird.f32 %v297
        %v303 = vsel %vm302, %v297, %v301
        %v304 = vmul.f32 %v296, %v303
        %v305 = vsub.f32 %v291, %v304
        %v306 = vmul.f32 %v305, %v305
        %v307 = vsel %vm293, %v306, 0.0
        %308 = vadd.xlane.f32.xlu0 %v307
        %v309 = vpop.xlane.xlu0 %308
        %v310 = vmul.f32 %v309, %v303
        %v311 = vadd.f32 %v310, 1e-06
        %v312 = vrsqrt.pop %v311
        %v313 = vmul.f32 %v312, %v311
        %v314 = vmul.f32 %v313, %v312
        %v315 = vmul.f32 0.5, %v314
        %v316 = vsub.f32 1.5, %v315
        %v317 = vmul.f32 %v312, %v316
        %vm318 = vweird.f32 %v311
        %vm319 = vweird.f32 %v312
        %vm320 = vmor %vm318, %vm319
        %v321 = vsel %vm320, %v312, %v317
        %v322 = vmul.f32 %v305, %v321
        %v323 = vperm.slane %v292, 0
        %v324 = vmul.f32 %v322, %v323
        %v325 = vperm.slane %v292, 1
        %v326 = vadd.f32 %v324, %v325
        %v327 = vpack.c.bf16 %v326, %v326
        %v328 = vld [vmem:[#allocation8] sm:$0xf]
        %v329 = vld [vmem:[#allocation8 + $0x4] sm:$0xf]
        %v330 = vld [vmem:[#allocation8 + $0x8] sm:$0xf]
        %v331 = vld [vmem:[#allocation8 + $0xc] sm:$0xf]
        %v332 = vld [vmem:[%s3] sm:$0x1]
        %v334 = vperm.slane %v332, 0
        %v340 = vunpack.c.l.b16 %v328
        %v341 = vunpack.c.l.b16 %v329
        %v342 = vunpack.c.l.b16 %v330
        %v343 = vunpack.c.l.b16 %v331
        %v344 = vpack.c.b16 %v341, %v340
        %v345 = vpack.c.b16 %v343, %v342
        %v349 = vsel %vm293, %v327, 0
        %351 = vmatpush.bf16.msra.mxu0 0
        %352 = vmatpush.bf16.msra.mxu0 0
        %353 = vmatpush.bf16.msra.mxu0 0
        %354 = vmatpush.bf16.msra.mxu0 0
        %355 = vmatpush.bf16.msra.mxu0 0
        %356 = vmatpush.bf16.msra.mxu0 0
        %357 = vmatpush.bf16.msra.mxu0 %v345
        %358 = vmatpush.bf16.msra.mxu0 %v344
        %359 = vmatmul.bf16.gmra.mxu0 %v349
        %v360 = vpop.f32.mrf.mxu0
        %v361 = vadd.f32 %v334, %v360
        %v362 = vpop.f32.mrf.mxu0
        %363 = vdwg.mxu0
        %v364 = vpack.c.bf16 %v361, %v361
        %366 = vrot.lane.b32.xlu0 %v364, 96
        %v367 = vpop.permute.xlu0 %366
        %vm368 = vcmask 64512
        %v370 = vsel %vm368, %v364, 0
        %v373 = vsel %vm368, %v367, 0
        %375 = vmatpush.bf16.xpose.msra.mxu0 0
        %376 = vmatpush.bf16.xpose.msra.mxu0 0
        %377 = vmatpush.bf16.xpose.msra.mxu0 0
        %378 = vmatpush.bf16.xpose.msra.mxu0 0
        %379 = vmatpush.bf16.xpose.msra.mxu0 0
        %380 = vmatpush.bf16.xpose.msra.mxu0 0
        %381 = vmatpush.bf16.xpose.msra.mxu0 0
        %382 = vmatpush.bf16.xpose.msra.mxu0 %v373
        %383 = vmatmul.bf16.gmra.mxu0 %v370
        %v384 = vpop.f32.mrf.mxu0
        %v385 = vadd.f32 0.0, %v384
        %v386 = vpop.f32.mrf.mxu0
        %387 = vdwg.mxu0
        %v388 = vsel %vm368, %v385, -inf
        %389 = vmax.xlane.f32.xlu0 %v388
        %v390 = vpop.xlane.xlu0 %389
        %v391 = vsub.f32 %v385, %v390
        %v392 = vmul.f32 %v391, 1.442695
        %v393 = vpow.pop %v392
        %v394 = vsel %vm368, %v393, 0.0
        %395 = vadd.xlane.f32.xlu0 %v394
        %v396 = vpop.xlane.xlu0 %395
        %v397 = vrcp.pop %v396
        %v398 = vmul.f32 %v396, %v397
        %v399 = vsub.f32 1.0, %v398
        %v400 = vmul.f32 %v397, %v399
        %v401 = vadd.f32 %v397, %v400
        %vm402 = vweird.f32 %v396
        %vm403 = vweird.f32 %v397
        %vm404 = vmor %vm402, %vm403
        %v405 = vsel %vm404, %v397, %v401
        %v406 = vand.u32 2147483647, %v396
        %vm407 = vcmp.eq.f32.partialorder %v406, 8.507059e+37
        %v408 = vand.u32 %v396, 2147483648
        %v409 = vor.u32 1.1754944e-38, %v408
        %v410 = vsel %vm407, %v409, %v405
        %v411 = vmul.f32 %v393, %v410
        %v412 = vpack.c.bf16 %v411, %v411
        %413 = vrot.lane.b32.xlu0 %v364, 64
        %v414 = vpop.permute.xlu0 %413
        %v416 = vsel %vm368, %v412, 0
        %vm418 = vcmask 1043456
        %v420 = vsel %vm418, %v414, 0
        %422 = vmatpush.bf16.msra.mxu0 0
        %423 = vmatpush.bf16.msra.mxu0 0
        %424 = vmatpush.bf16.msra.mxu0 0
        %425 = vmatpush.bf16.msra.mxu0 0
        %426 = vmatpush.bf16.msra.mxu0 0
        %427 = vmatpush.bf16.msra.mxu0 0
        %428 = vmatpush.bf16.msra.mxu0 0
        %429 = vmatpush.bf16.msra.mxu0 %v420
        %430 = vmatmul.bf16.gmra.mxu0 %v416
        %v431 = vpop.f32.mrf.mxu0
        %v432 = vadd.f32 0.0, %v431
        %v433 = vpop.f32.mrf.mxu0
        %434 = vdwg.mxu0
        %v435 = vpack.c.bf16 %v432, %v432
        %vm436 = vcmask 60416
        %437 = vst.msk [vmem:[#allocation2] sm:$0xf] %vm436, %v435
        %438 = vrot.lane.b32.xlu0 %v364, 120
        %v439 = vpop.permute.xlu0 %438
        %440 = vrot.lane.b32.xlu0 %v364, 88
        %v441 = vpop.permute.xlu0 %440
        %v443 = vsel %vm368, %v439, 0
        %v446 = vsel %vm368, %v441, 0
        %448 = vmatpush.bf16.xpose.msra.mxu0 0
        %449 = vmatpush.bf16.xpose.msra.mxu0 0
        %450 = vmatpush.bf16.xpose.msra.mxu0 0
        %451 = vmatpush.bf16.xpose.msra.mxu0 0
        %452 = vmatpush.bf16.xpose.msra.mxu0 0
        %453 = vmatpush.bf16.xpose.msra.mxu0 0
        %454 = vmatpush.bf16.xpose.msra.mxu0 0
        %455 = vmatpush.bf16.xpose.msra.mxu0 %v446
        %456 = vmatmul.bf16.gmra.mxu0 %v443
        %v457 = vpop.f32.mrf.mxu0
        %v458 = vadd.f32 0.0, %v457
        %v459 = vpop.f32.mrf.mxu0
        %460 = vdwg.mxu0
        %v461 = vsel %vm368, %v458, -inf
        %462 = vmax.xlane.f32.xlu0 %v461
        %v463 = vpop.xlane.xlu0 %462
        %v464 = vsub.f32 %v458, %v463
        %v465 = vmul.f32 %v464, 1.442695
        %v466 = vpow.pop %v465
        %v467 = vsel %vm368, %v466, 0.0
        %468 = vadd.xlane.f32.xlu0 %v467
        %v469 = vpop.xlane.xlu0 %468
        %v470 = vrcp.pop %v469
        %v471 = vmul.f32 %v469, %v470
        %v472 = vsub.f32 1.0, %v471
        %v473 = vmul.f32 %v470, %v472
        %v474 = vadd.f32 %v470, %v473
        %vm475 = vweird.f32 %v469
        %vm476 = vweird.f32 %v470
        %vm477 = vmor %vm475, %vm476
        %v478 = vsel %vm477, %v470, %v474
        %v479 = vand.u32 2147483647, %v469
        %vm480 = vcmp.eq.f32.partialorder %v479, 8.507059e+37
        %v481 = vand.u32 %v469, 2147483648
        %v482 = vor.u32 1.1754944e-38, %v481
        %v483 = vsel %vm480, %v482, %v478
        %v484 = vmul.f32 %v466, %v483
        %v485 = vpack.c.bf16 %v484, %v484
        %486 = vrot.lane.b32.xlu0 %v364, 56
        %v487 = vpop.permute.xlu0 %486
        %v489 = vsel %vm368, %v485, 0
        %v492 = vsel %vm418, %v487, 0
        %494 = vmatpush.bf16.msra.mxu0 0
        %495 = vmatpush.bf16.msra.mxu0 0
        %496 = vmatpush.bf16.msra.mxu0 0
        %497 = vmatpush.bf16.msra.mxu0 0
        %498 = vmatpush.bf16.msra.mxu0 0
        %499 = vmatpush.bf16.msra.mxu0 0
        %500 = vmatpush.bf16.msra.mxu0 0
        %501 = vmatpush.bf16.msra.mxu0 %v492
        %502 = vmatmul.bf16.gmra.mxu0 %v489
        %v503 = vpop.f32.mrf.mxu0
        %v504 = vadd.f32 0.0, %v503
        %v505 = vpop.f32.mrf.mxu0
        %506 = vdwg.mxu0
        %v507 = vpack.c.bf16 %v504, %v504
        %509 = vrot.lane.b32.xlu0 %v507, 8
        %v510 = vpop.permute.xlu0 %509
        %vm512 = vcmask 126016
        %513 = vst.msk [vmem:[#allocation2] sm:$0xf] %vm512, %v510
        %514 = vrot.lane.b32.xlu0 %v364, 112
        %v515 = vpop.permute.xlu0 %514
        %516 = vrot.lane.b32.xlu0 %v364, 80
        %v517 = vpop.permute.xlu0 %516
        %v519 = vsel %vm368, %v515, 0
        %v522 = vsel %vm368, %v517, 0
        %524 = vmatpush.bf16.xpose.msra.mxu0 0
        %525 = vmatpush.bf16.xpose.msra.mxu0 0
        %526 = vmatpush.bf16.xpose.msra.mxu0 0
        %527 = vmatpush.bf16.xpose.msra.mxu0 0
        %528 = vmatpush.bf16.xpose.msra.mxu0 0
        %529 = vmatpush.bf16.xpose.msra.mxu0 0
        %530 = vmatpush.bf16.xpose.msra.mxu0 0
        %531 = vmatpush.bf16.xpose.msra.mxu0 %v522
        %532 = vmatmul.bf16.gmra.mxu0 %v519
        %v533 = vpop.f32.mrf.mxu0
        %v534 = vadd.f32 0.0, %v533
        %v535 = vpop.f32.mrf.mxu0
        %536 = vdwg.mxu0
        %v537 = vsel %vm368, %v534, -inf
        %538 = vmax.xlane.f32.xlu0 %v537
        %v539 = vpop.xlane.xlu0 %538
        %v540 = vsub.f32 %v534, %v539
        %v541 = vmul.f32 %v540, 1.442695
        %v542 = vpow.pop %v541
        %v543 = vsel %vm368, %v542, 0.0
        %544 = vadd.xlane.f32.xlu0 %v543
        %v545 = vpop.xlane.xlu0 %544
        %v546 = vrcp.pop %v545
        %v547 = vmul.f32 %v545, %v546
        %v548 = vsub.f32 1.0, %v547
        %v549 = vmul.f32 %v546, %v548
        %v550 = vadd.f32 %v546, %v549
        %vm551 = vweird.f32 %v545
        %vm552 = vweird.f32 %v546
        %vm553 = vmor %vm551, %vm552
        %v554 = vsel %vm553, %v546, %v550
        %v555 = vand.u32 2147483647, %v545
        %vm556 = vcmp.eq.f32.partialorder %v555, 8.507059e+37
        %v557 = vand.u32 %v545, 2147483648
        %v558 = vor.u32 1.1754944e-38, %v557
        %v559 = vsel %vm556, %v558, %v554
        %v560 = vmul.f32 %v542, %v559
        %v561 = vpack.c.bf16 %v560, %v560
        %562 = vrot.lane.b32.xlu0 %v364, 48
        %v563 = vpop.permute.xlu0 %562
        %v565 = vsel %vm368, %v561, 0
        %v568 = vsel %vm418, %v563, 0
        %570 = vmatpush.bf16.msra.mxu0 0
        %571 = vmatpush.bf16.msra.mxu0 0
        %572 = vmatpush.bf16.msra.mxu0 0
        %573 = vmatpush.bf16.msra.mxu0 0
        %574 = vmatpush.bf16.msra.mxu0 0
        %575 = vmatpush.bf16.msra.mxu0 0
        %576 = vmatpush.bf16.msra.mxu0 0
        %577 = vmatpush.bf16.msra.mxu0 %v568
        %578 = vmatmul.bf16.gmra.mxu0 %v565
        %v579 = vpop.f32.mrf.mxu0
        %v580 = vadd.f32 0.0, %v579
        %v581 = vpop.f32.mrf.mxu0
        %582 = vdwg.mxu0
        %v583 = vpack.c.bf16 %v580, %v580
        %585 = vrot.lane.b32.xlu0 %v583, 16
        %v586 = vpop.permute.xlu0 %585
        %vm588 = vcmask 191616
        %589 = vst.msk [vmem:[#allocation2] sm:$0xf] %vm588, %v586
        %590 = vrot.lane.b32.xlu0 %v364, 104
        %v591 = vpop.permute.xlu0 %590
        %592 = vrot.lane.b32.xlu0 %v364, 72
        %v593 = vpop.permute.xlu0 %592
        %v595 = vsel %vm368, %v591, 0
        %v598 = vsel %vm368, %v593, 0
        %600 = vmatpush.bf16.xpose.msra.mxu0 0
        %601 = vmatpush.bf16.xpose.msra.mxu0 0
        %602 = vmatpush.bf16.xpose.msra.mxu0 0
        %603 = vmatpush.bf16.xpose.msra.mxu0 0
        %604 = vmatpush.bf16.xpose.msra.mxu0 0
        %605 = vmatpush.bf16.xpose.msra.mxu0 0
        %606 = vmatpush.bf16.xpose.msra.mxu0 0
        %607 = vmatpush.bf16.xpose.msra.mxu0 %v598
        %608 = vmatmul.bf16.gmra.mxu0 %v595
        %v609 = vpop.f32.mrf.mxu0
        %v610 = vadd.f32 0.0, %v609
        %v611 = vpop.f32.mrf.mxu0
        %612 = vdwg.mxu0
        %v613 = vsel %vm368, %v610, -inf
        %614 = vmax.xlane.f32.xlu0 %v613
        %v615 = vpop.xlane.xlu0 %614
        %v616 = vsub.f32 %v610, %v615
        %v617 = vmul.f32 %v616, 1.442695
        %v618 = vpow.pop %v617
        %v619 = vsel %vm368, %v618, 0.0
        %620 = vadd.xlane.f32.xlu0 %v619
        %v621 = vpop.xlane.xlu0 %620
        %v622 = vrcp.pop %v621
        %v623 = vmul.f32 %v621, %v622
        %v624 = vsub.f32 1.0, %v623
        %v625 = vmul.f32 %v622, %v624
        %v626 = vadd.f32 %v622, %v625
        %vm627 = vweird.f32 %v621
        %vm628 = vweird.f32 %v622
        %vm629 = vmor %vm627, %vm628
        %v630 = vsel %vm629, %v622, %v626
        %v631 = vand.u32 2147483647, %v621
        %vm632 = vcmp.eq.f32.partialorder %v631, 8.507059e+37
        %v633 = vand.u32 %v621, 2147483648
        %v634 = vor.u32 1.1754944e-38, %v633
        %v635 = vsel %vm632, %v634, %v630
        %v636 = vmul.f32 %v618, %v635
        %v637 = vpack.c.bf16 %v636, %v636
        %638 = vrot.lane.b32.xlu0 %v364, 40
        %v639 = vpop.permute.xlu0 %638
        %v641 = vsel %vm368, %v637, 0
        %v644 = vsel %vm418, %v639, 0
        %646 = vmatpush.bf16.msra.mxu0 0
        %647 = vmatpush.bf16.msra.mxu0 0
        %648 = vmatpush.bf16.msra.mxu0 0
        %649 = vmatpush.bf16.msra.mxu0 0
        %650 = vmatpush.bf16.msra.mxu0 0
        %651 = vmatpush.bf16.msra.mxu0 0
        %652 = vmatpush.bf16.msra.mxu0 0
        %653 = vmatpush.bf16.msra.mxu0 %v644
        %654 = vmatmul.bf16.gmra.mxu0 %v641
        %v655 = vpop.f32.mrf.mxu0
        %v656 = vadd.f32 0.0, %v655
        %v657 = vpop.f32.mrf.mxu0
        %658 = vdwg.mxu0
        %v659 = vpack.c.bf16 %v656, %v656
        %661 = vrot.lane.b32.xlu0 %v659, 24
        %v662 = vpop.permute.xlu0 %661
        %vm664 = vcmask 257216
        %665 = vst.msk [vmem:[#allocation2] sm:$0xf] %vm664, %v662
        %v666 = vld [vmem:[#allocation2] sm:$0xf]
        %v667 = vld [vmem:[#allocation9] sm:$0xf]
        %v668 = vld [vmem:[#allocation9 + $0x4] sm:$0xf]
        %v669 = vld [vmem:[#allocation9 + $0x8] sm:$0xf]
        %v670 = vld [vmem:[#allocation9 + $0xc] sm:$0xf]
        %v671 = vperm.slane %v292, 4
        %v676 = vunpack.c.l.b16 %v667
        %v677 = vunpack.c.l.b16 %v668
        %v678 = vunpack.c.l.b16 %v669
        %v679 = vunpack.c.l.b16 %v670
        %v680 = vpack.c.b16 %v677, %v676
        %v681 = vpack.c.b16 %v679, %v678
        %v685 = vsel %vm293, %v666, 0
        %687 = vmatpush.bf16.msra.mxu0 0
        %688 = vmatpush.bf16.msra.mxu0 0
        %689 = vmatpush.bf16.msra.mxu0 0
        %690 = vmatpush.bf16.msra.mxu0 0
        %691 = vmatpush.bf16.msra.mxu0 0
        %692 = vmatpush.bf16.msra.mxu0 0
        %693 = vmatpush.bf16.msra.mxu0 %v681
        %694 = vmatpush.bf16.msra.mxu0 %v680
        %695 = vmatmul.bf16.gmra.mxu0 %v685
        %v696 = vpop.f32.mrf.mxu0
        %v697 = vadd.f32 %v671, %v696
        %v698 = vpop.f32.mrf.mxu0
        %699 = vdwg.mxu0
        %v700 = vadd.f32 %v291, %v697
        %v701 = vsel %vm293, %v700, 0.0
        %702 = vadd.xlane.f32.xlu0 %v701
        %v703 = vpop.xlane.xlu0 %702
        %v704 = vmul.f32 %v703, %v303
        %v705 = vsub.f32 %v700, %v704
        %v706 = vmul.f32 %v705, %v705
        %v707 = vsel %vm293, %v706, 0.0
        %708 = vadd.xlane.f32.xlu0 %v707
        %v709 = vpop.xlane.xlu0 %708
        %v710 = vmul.f32 %v709, %v303
        %v711 = vadd.f32 %v710, 1e-06
        %v712 = vrsqrt.pop %v711
        %v713 = vmul.f32 %v712, %v711
        %v714 = vmul.f32 %v713, %v712
        %v715 = vmul.f32 0.5, %v714
        %v716 = vsub.f32 1.5, %v715
        %v717 = vmul.f32 %v712, %v716
        %vm718 = vweird.f32 %v711
        %vm719 = vweird.f32 %v712
        %vm720 = vmor %vm718, %vm719
        %v721 = vsel %vm720, %v712, %v717
        %v722 = vmul.f32 %v705, %v721
        %v723 = vperm.slane %v292, 2
        %v724 = vmul.f32 %v722, %v723
        %v725 = vperm.slane %v292, 3
        %v726 = vadd.f32 %v724, %v725
        %v727 = vadd.f32 %v700, %v726
        %728 = vst.msk [vmem:[%s289] sm:$0xff] %vm293, %v727
        %s729 = sand.u32 %s142, 1
        %s730 = scalar_lea.sflag [#allocation5], %s729
        %s731 = sand.u32 %s142, 1
        %s732 = smul.addr %s731, 8
        %s733 = scalar_lea.vmem [#allocation11], %s732
        // Predicated region
        $region57: #{tpu_custom_call.1} parent=39 // pred_check
          %p734 = pneg %p152
        $region58: #{tpu_custom_call.1} parent=39 // pred_check_branch
          %736 = sbr.rel (%p734) target = $region60
        $region59: #{tpu_custom_call.1} parent=39 // pred_region
          %738 = vsyncadd %s730, 0
          %s739 = smul.addr %s24, 8
          %s740 = scalar_lea.hbm %s5, %s739
          %s742 = sshll.u32 %s733, 4
          %s743 = int_to_ptr.vmem [resolvable:$true] %s742
          %s744 = sshll.u32 %s740, 4
          %s745 = int_to_ptr.hbm [resolvable:$true] %s744
          %747 = dma.vmem_to_hbm [thread:$0]  %s743, 128, %s745, %s730
        $region60: #{tpu_custom_call.1} parent=39 // pred_fallthru
          _
      $region40: #{tpu_custom_call.1} parent=5 // pred_fallthru
        _
      %p748 = scmp.le.s32.totalorder 2, %s19
      // Predicated region
      $region61: #{tpu_custom_call.1} parent=5 // pred_check
        %p749 = pneg %p748
      $region62: #{tpu_custom_call.1} parent=5 // pred_check_branch
        %751 = sbr.rel (%p749) target = $region64
      $region63: #{tpu_custom_call.1} parent=5 // pred_region
        %s752 = ssub.s32 %s19, 2
        // Predicated region
        $region65: #{tpu_custom_call.1} parent=63 // pred_check
          %p753 = pneg %p158
        $region66: #{tpu_custom_call.1} parent=63 // pred_check_branch
          %755 = sbr.rel (%p753) target = $region68
        $region67: #{tpu_custom_call.1} parent=63 // pred_region
          %s756 = sand.u32 %s143, 1
          %s757 = scalar_lea.sflag [#allocation5], %s756
          %s758 = sand.u32 %s143, 1
          %s759 = smul.addr %s758, 8
          %s760 = scalar_lea.vmem [#allocation11], %s759
          %762 = dma.done %s757, 128
        $region68: #{tpu_custom_call.1} parent=63 // pred_fallthru
          _
      $region64: #{tpu_custom_call.1} parent=5 // pred_fallthru
        _
    $region6: #{tpu_custom_call.1} parent=1 // loop_footer
      %s23 = sadd.s32 1, %s19
    $region7: #{tpu_custom_call.1} parent=1 // loop_footer_branch
      %18 = sbr.rel target = $region3
    $region8: #{tpu_custom_call.1} parent=1 // loop_exit
      _
    %763 = vsyncpa [#allocation4], 1
    %s764 = scalar_lea.sflag [#allocation4], 1
    %765 = vsyncpa %s764, 1
    %766 = vsyncpa [#allocation7], 1
    %767 = vsyncpa [#allocation10], 1
    %768 = vsyncpa [#allocation5], 1
    %s769 = scalar_lea.sflag [#allocation5], 1
    %770 = vsyncpa %s769, 1

</llo_original>
